<compile_context>
chip_gen: v6e
topology: v6e:2x2x1
jax: 0.10.0
libtpu: 0.0.40
codegen_flags: <defaults>
</compile_context>

<pallas_src>
import functools

import jax
import jax.numpy as jnp
from jax.experimental import pallas as pl
from jax.experimental.pallas import tpu as pltpu


# ----------------------------------------------------------------------------
# Pallas kernel: fused complex 1x1 conv as two accumulating MXU matmuls (+bias)
# ----------------------------------------------------------------------------
def _complex_1x1_conv_kernel(xr_ref, xi_ref, wl_ref, wr_ref, b_ref, o_ref):
    # xr_ref/xi_ref: (Cin, T)      real / imag pixels, spatial on lanes.
    # wl_ref:        (2Cout, Cin)  [[Wr],[Wi]]   (applied to xr)
    # wr_ref:        (2Cout, Cin)  [[-Wi],[Wr]]  (applied to xi)
    # b_ref:         (2Cout, 1)    packed bias [br - bi ; br + bi]
    # o_ref:         (2Cout, T)    packed [out_re ; out_im], lane-dense stores.
    o_ref[...] = (
        jnp.dot(wl_ref[...], xr_ref[...], preferred_element_type=jnp.float32)
        + jnp.dot(wr_ref[...], xi_ref[...], preferred_element_type=jnp.float32)
        + b_ref[...]
    )


# ----------------------------------------------------------------------------
# Tile selection: lane-dense (multiple of 128), prefers exact divisors of the
# padded spatial extent, targets ~8 total grid steps, never below 512 lanes
# for large inputs (store efficiency / per-step overhead), caps at max_lanes
# (2048 default, safe for v7x's 64 MiB VMEM; raise on v5e/v6e if desired).
# ----------------------------------------------------------------------------
def _choose_tile(hw, n, max_lanes=2048):
    hw128 = ((hw + 127) // 128) * 128           # pad spatial axis to lanes
    if hw128 <= 512:
        return hw128, hw128                     # too small to bother splitting
    max_lanes = max(512, (max_lanes // 128) * 128)
    min_steps = max(2, -(-8 // max(n, 1)))      # aim for >= ~8 total grid steps
    divisors = [c for c in range(128, min(max_lanes, hw128) + 1, 128)
                if hw128 % c == 0]
    good = [c for c in divisors if c >= 512 and hw128 // c >= min_steps]
    if good:
        return max(good), hw128
    if divisors and max(divisors) >= 512:
        return max(divisors), hw128
    tile = min(512, max_lanes)                  # pad to a 512-lane tile
    return tile, -(-hw128 // tile) * tile


# ----------------------------------------------------------------------------
# Wrapper
# ----------------------------------------------------------------------------
@functools.partial(jax.jit, static_argnames=("max_tile_lanes", "use_bf16_inputs"))
def upsample_forward(x, feature_map, params, *, max_tile_lanes=2048,
                     use_bf16_inputs=False):
    """x: complex64 NCHW (N,C,H,W); feature_map: complex64 (N,C//2,2H,2W).

    Returns complex64 (N, C, 2H, 2W).
    """
    wr, br, wi, bi = params
    n, cin, h, w = x.shape
    cout = wr.shape[0]
    hw = h * w
    tile, hw_pad = _choose_tile(hw, n, max_tile_lanes)

    in_dtype = jnp.bfloat16 if use_bf16_inputs else jnp.float32

    def prep(part):
        p = part.astype(jnp.float32).reshape(n, cin, hw)
        if hw_pad != hw:
            p = jnp.pad(p, ((0, 0), (0, 0), (0, hw_pad - hw)))
        return p.astype(in_dtype)

    # Separate real / imag operands (no channel-packed HBM intermediate).
    xr = prep(jnp.real(x))
    xi = prep(jnp.imag(x))

    wr2 = wr.reshape(cout, cin).astype(jnp.float32)
    wi2 = wi.reshape(cout, cin).astype(jnp.float32)
    w_left = jnp.concatenate([wr2, wi2], axis=0).astype(in_dtype)    # acts on xr
    w_right = jnp.concatenate([-wi2, wr2], axis=0).astype(in_dtype)  # acts on xi
    # Packed bias: real rows get (br - bi), imag rows get (br + bi).
    b_blk = jnp.concatenate([br - bi, br + bi]).reshape(2 * cout, 1)
    b_blk = b_blk.astype(jnp.float32)

    grid = (n, hw_pad // tile)

    # VMEM budget: double-buffered x/out tiles + weights, with headroom.
    bpe = 2 if use_bf16_inputs else 4
    buf_bytes = tile * (2 * cin * bpe + 2 * cout * 4)
    w_bytes = 2 * (2 * cout) * cin * bpe + 2 * cout * 4
    vmem_limit = int(min(40 * 1024 * 1024,
                         max(16 * 1024 * 1024, 3 * buf_bytes + 4 * w_bytes)))

    y = pl.pallas_call(
        _complex_1x1_conv_kernel,
        out_shape=jax.ShapeDtypeStruct((n, 2 * cout, hw_pad), jnp.float32),
        grid=grid,
        in_specs=[
            pl.BlockSpec((None, cin, tile), lambda b, t: (b, 0, t)),
            pl.BlockSpec((None, cin, tile), lambda b, t: (b, 0, t)),
            pl.BlockSpec((2 * cout, cin), lambda b, t: (0, 0)),
            pl.BlockSpec((2 * cout, cin), lambda b, t: (0, 0)),
            pl.BlockSpec((2 * cout, 1), lambda b, t: (0, 0)),
        ],
        out_specs=pl.BlockSpec((None, 2 * cout, tile), lambda b, t: (b, 0, t)),
        compiler_params=pltpu.CompilerParams(
            dimension_semantics=("parallel", "parallel"),
            vmem_limit_bytes=vmem_limit,
            allow_input_fusion=[True, True, False, False, False],
        ),
        cost_estimate=pl.CostEstimate(
            flops=2 * n * hw_pad * (2 * cin) * (2 * cout),
            transcendentals=0,
            bytes_accessed=(2 * n * cin * hw_pad * bpe
                            + 4 * n * 2 * cout * hw_pad
                            + 2 * w_bytes),
        ),
    )(xr, xi, w_left, w_right, b_blk)

    # conv(upsample(x)) == upsample(conv(x)) for a 1x1/stride-1 conv, so the
    # nearest-2x replication happens AFTER the kernel.  Complex assembly is
    # done at the SMALL (h, w) resolution; the replication + channel concat
    # is pure data movement left to XLA (Pallas TPU cannot emit complex64).
    y = y[:, :, :hw].reshape(n, 2 * cout, h, w)
    yc = jax.lax.complex(y[:, :cout], y[:, cout:])
    up = jnp.broadcast_to(
        yc[:, :, :, None, :, None], (n, cout, h, 2, w, 2)
    ).reshape(n, cout, 2 * h, 2 * w)
    return jnp.concatenate([up, feature_map.astype(up.dtype)], axis=1)


# ----------------------------------------------------------------------------
# Pure-JAX reference (for correctness check)
# ----------------------------------------------------------------------------
def upsample_reference(x, feature_map, params):
    wr, br, wi, bi = params
    xr = jnp.real(x).astype(jnp.float32)
    xi = jnp.imag(x).astype(jnp.float32)
    n, c, h, w = xr.shape

    def up2(t):
        return jnp.broadcast_to(
            t[:, :, :, None, :, None], (n, c, h, 2, w, 2)
        ).reshape(n, c, 2 * h, 2 * w)

    ur, ui = up2(xr), up2(xi)

    def conv(inp, wt, b):
        out = jax.lax.conv_general_dilated(
            inp, wt, window_strides=(1, 1), padding='VALID',
            dimension_numbers=('NCHW', 'OIHW', 'NCHW'))
        return out + b[None, :, None, None]

    out_r = conv(ur, wr, br) - conv(ui, wi, bi)
    out_i = conv(ui, wr, br) + conv(ur, wi, bi)
    return jnp.concatenate([jax.lax.complex(out_r, out_i), feature_map], axis=1)


# ----------------------------------------------------------------------------
# Self-test
# ----------------------------------------------------------------------------
if __name__ == "__main__":
    def run_case(key, N, C, H, W):
        cout = C // 2
        ks = jax.random.split(key, 8)
        xr = jax.random.normal(ks[0], (N, C, H, W), jnp.float32)
        xi = jax.random.normal(ks[1], (N, C, H, W), jnp.float32)
        x = jax.lax.complex(xr, xi)                       # complex64 NCHW
        fr = jax.random.normal(ks[2], (N, cout, 2 * H, 2 * W), jnp.float32)
        fi = jax.random.normal(ks[3], (N, cout, 2 * H, 2 * W), jnp.float32)
        fmap = jax.lax.complex(fr, fi)                    # skip connection

        # ComplexConv2d(C, C//2, 1, 1): two real 1x1 convs with bias.
        wr = 0.3 * jax.random.normal(ks[4], (cout, C, 1, 1), jnp.float32)
        wi = 0.3 * jax.random.normal(ks[5], (cout, C, 1, 1), jnp.float32)
        br = 0.1 * jax.random.normal(ks[6], (cout,), jnp.float32)
        bi = 0.1 * jax.random.normal(ks[7], (cout,), jnp.float32)
        params = (wr, br, wi, bi)

        out = jax.block_until_ready(upsample_forward(x, fmap, params))
        assert out.shape == (N, C, 2 * H, 2 * W), out.shape
        assert out.dtype == jnp.complex64, out.dtype

        ref = upsample_reference(x, fmap, params)
        assert jnp.allclose(jnp.real(out), jnp.real(ref), atol=1e-3, rtol=1e-3)
        assert jnp.allclose(jnp.imag(out), jnp.imag(ref), atol=1e-3, rtol=1e-3)

    key = jax.random.PRNGKey(0)
    k1, k2, k3 = jax.random.split(key, 3)
    run_case(k1, 2, 4, 16, 16)    # spec-sized case: single spatial tile
    run_case(k2, 1, 8, 64, 64)    # hw=4096 -> multi-step spatial grid (tile=512)
    run_case(k3, 1, 4, 10, 12)    # hw=120 -> exercises lane padding path

    print("KERNEL_OK")
</pallas_src>

<mosaic_0001>
module attributes {stable_mosaic.version = 11 : i64} {
  func.func @_complex_1x1_conv_kernel(%arg0: i32, %arg1: i32, %arg2: memref<1x4x256xf32, #tpu.memory_space<vmem>>, %arg3: memref<1x4x256xf32, #tpu.memory_space<vmem>>, %arg4: memref<4x4xf32, #tpu.memory_space<vmem>>, %arg5: memref<4x4xf32, #tpu.memory_space<vmem>>, %arg6: memref<4x1xf32, #tpu.memory_space<vmem>>, %arg7: memref<1x4x256xf32, #tpu.memory_space<vmem>>) attributes {dimension_semantics = [#tpu.dimension_semantics<parallel>, #tpu.dimension_semantics<parallel>], iteration_bounds = array<i64: 2, 1>, scalar_prefetch = 0 : i64, scratch_operands = 0 : i64, tpu.core_type = #tpu.core_type<tc>, window_params = [{transform_indices = @transform_0, window_bounds = array<i64: 1, 4, 256>}, {transform_indices = @transform_1, window_bounds = array<i64: 1, 4, 256>}, {pipeline_mode = #tpu.pipeline_mode<synchronous>, transform_indices = @transform_2, window_bounds = array<i64: 4, 4>}, {pipeline_mode = #tpu.pipeline_mode<synchronous>, transform_indices = @transform_3, window_bounds = array<i64: 4, 4>}, {pipeline_mode = #tpu.pipeline_mode<synchronous>, transform_indices = @transform_4, window_bounds = array<i64: 4, 1>}, {transform_indices = @transform_5, window_bounds = array<i64: 1, 4, 256>}]} {
    %c0 = arith.constant 0 : index
    %c0_0 = arith.constant 0 : index
    %0 = vector.load %arg4[%c0, %c0_0] : memref<4x4xf32, #tpu.memory_space<vmem>>, vector<4x4xf32>
    %c0_1 = arith.constant 0 : index
    %c0_2 = arith.constant 0 : index
    %c0_3 = arith.constant 0 : index
    %1 = vector.load %arg2[%c0_1, %c0_2, %c0_3] : memref<1x4x256xf32, #tpu.memory_space<vmem>>, vector<1x4x256xf32>
    %2 = vector.shape_cast %1 : vector<1x4x256xf32> to vector<4x256xf32>
    %cst = arith.constant dense<0.000000e+00> : vector<4x256xf32>
    %3 = tpu.matmul %0, %2, %cst {dimension_numbers = #tpu.dot_dimension_numbers<[1], [0], [0], [1], [0, 0, 1, 1], [], []>} : vector<4x4xf32>, vector<4x256xf32>, vector<4x256xf32> -> vector<4x256xf32>
    %c0_4 = arith.constant 0 : index
    %c0_5 = arith.constant 0 : index
    %4 = vector.load %arg5[%c0_4, %c0_5] : memref<4x4xf32, #tpu.memory_space<vmem>>, vector<4x4xf32>
    %c0_6 = arith.constant 0 : index
    %c0_7 = arith.constant 0 : index
    %c0_8 = arith.constant 0 : index
    %5 = vector.load %arg3[%c0_6, %c0_7, %c0_8] : memref<1x4x256xf32, #tpu.memory_space<vmem>>, vector<1x4x256xf32>
    %6 = vector.shape_cast %5 : vector<1x4x256xf32> to vector<4x256xf32>
    %cst_9 = arith.constant dense<0.000000e+00> : vector<4x256xf32>
    %7 = tpu.matmul %4, %6, %cst_9 {dimension_numbers = #tpu.dot_dimension_numbers<[1], [0], [0], [1], [0, 0, 1, 1], [], []>} : vector<4x4xf32>, vector<4x256xf32>, vector<4x256xf32> -> vector<4x256xf32>
    %8 = arith.addf %3, %7 : vector<4x256xf32>
    %c0_10 = arith.constant 0 : index
    %c0_11 = arith.constant 0 : index
    %9 = vector.load %arg6[%c0_10, %c0_11] : memref<4x1xf32, #tpu.memory_space<vmem>>, vector<4x1xf32>
    %10 = vector.broadcast %9 : vector<4x1xf32> to vector<4x256xf32>
    %11 = arith.addf %8, %10 : vector<4x256xf32>
    %c0_12 = arith.constant 0 : index
    %c0_13 = arith.constant 0 : index
    %c0_14 = arith.constant 0 : index
    %12 = vector.load %arg7[%c0_12, %c0_13, %c0_14] : memref<1x4x256xf32, #tpu.memory_space<vmem>>, vector<1x4x256xf32>
    %13 = vector.shape_cast %12 : vector<1x4x256xf32> to vector<4x256xf32>
    %14 = vector.shape_cast %11 : vector<4x256xf32> to vector<1x4x256xf32>
    tpu.vector_store %arg7[%c0_12, %c0_13, %c0_14], %14 {strides = array<i32>} : memref<1x4x256xf32, #tpu.memory_space<vmem>>, vector<1x4x256xf32>,
    return
  }
  func.func @transform_0(%arg0: i32, %arg1: i32) -> (i32, i32, i32) {
    %c0_i32 = arith.constant 0 : i32
    %c0_i32_0 = arith.constant 0 : i32
    return %arg0, %c0_i32, %arg1 : i32, i32, i32
  }
  func.func @transform_1(%arg0: i32, %arg1: i32) -> (i32, i32, i32) {
    %c0_i32 = arith.constant 0 : i32
    %c0_i32_0 = arith.constant 0 : i32
    return %arg0, %c0_i32, %arg1 : i32, i32, i32
  }
  func.func @transform_2(%arg0: i32, %arg1: i32) -> (i32, i32) {
    %c0_i32 = arith.constant 0 : i32
    %c0_i32_0 = arith.constant 0 : i32
    %c0_i32_1 = arith.constant 0 : i32
    return %c0_i32, %c0_i32_0 : i32, i32
  }
  func.func @transform_3(%arg0: i32, %arg1: i32) -> (i32, i32) {
    %c0_i32 = arith.constant 0 : i32
    %c0_i32_0 = arith.constant 0 : i32
    %c0_i32_1 = arith.constant 0 : i32
    return %c0_i32, %c0_i32_0 : i32, i32
  }
  func.func @transform_4(%arg0: i32, %arg1: i32) -> (i32, i32) {
    %c0_i32 = arith.constant 0 : i32
    %c0_i32_0 = arith.constant 0 : i32
    %c0_i32_1 = arith.constant 0 : i32
    return %c0_i32, %c0_i32_0 : i32, i32
  }
  func.func @transform_5(%arg0: i32, %arg1: i32) -> (i32, i32, i32) {
    %c0_i32 = arith.constant 0 : i32
    %c0_i32_0 = arith.constant 0 : i32
    return %arg0, %c0_i32, %arg1 : i32, i32, i32
  }
}

</mosaic_0001>

<llo_original>
// kernel: neg.1
$region0: #{neg.1}
  #allocation0 [shape = 's32[1]{0}', space=sflag, size = 0x4, scoped, tag = 'scoped memory for neg.1']
  %s0 = inlined_call_operand.vmem [shape: f32[2,4], index: 0, kind: input, shape index: {}]
  %s1 = inlined_call_operand.vmem [shape: f32[2,4], index: 1, kind: output, shape index: {}]
  %v2 = vld [vmem:[%s0] sm:$0x3]
  %3 = xla_tuple %v2
  %4 = xla_tuple %3
  %v5 = vxor.u32 %v2, 2147483648
  %6 = xla_tuple %v5
  %7 = vst [vmem:[%s1] sm:$0x3] %v5

// kernel: custom-call
$region0: #{custom-call}
  %s0 = inlined_call_operand.hbm [shape: c64[2,4,16,16], index: 0, kind: input, shape index: {}]
  %s1 = inlined_call_operand.vmem [shape: f32[2,4,16,16], index: 1, kind: output, shape index: {}]
  $region1: #{custom-call} parent=0
    #allocation0 [shape = 's32[1]{0}', space=sflag, size = 0x4, scoped, tag = 'scoped memory for custom-call']
    %2 = vsyncpa [#allocation0], 0
    %s3 = sshll.u32 %s1, 4
    %s4 = int_to_ptr.vmem [resolvable:$true] %s3
    %6 = dma.hbm_to_vmem [thread:$0]  %s0, 2048, %s4, [#allocation0]
    %7 = dma.done [#allocation0], 2048
    %8 = vsyncpa [#allocation0], 1

// kernel: custom-call.1
$region0: #{custom-call.1}
  %s0 = inlined_call_operand.hbm [shape: c64[2,4,16,16], index: 0, kind: input, shape index: {}]
  %s1 = inlined_call_operand.vmem [shape: f32[2,4,16,16], index: 1, kind: output, shape index: {}]
  %s2 = scalar_lea.hbm %s0, 2048
  $region1: #{custom-call.1} parent=0
    #allocation0 [shape = 's32[1]{0}', space=sflag, size = 0x4, scoped, tag = 'scoped memory for custom-call.1']
    %3 = vsyncpa [#allocation0], 0
    %s4 = sshll.u32 %s1, 4
    %s5 = int_to_ptr.vmem [resolvable:$true] %s4
    %7 = dma.hbm_to_vmem [thread:$0]  %s2, 2048, %s5, [#allocation0]
    %8 = dma.done [#allocation0], 2048
    %9 = vsyncpa [#allocation0], 1

// kernel: custom-call.2
$region0: #{custom-call.2}
  %s0 = inlined_call_operand.hbm [shape: c64[2,2,32,32], index: 0, kind: input, shape index: {}]
  %s1 = inlined_call_operand.vmem [shape: f32[2,2,32,32], index: 1, kind: output, shape index: {}]
  $region1: #{custom-call.2} parent=0
    #allocation0 [shape = 's32[1]{0}', space=sflag, size = 0x4, scoped, tag = 'scoped memory for custom-call.2']
    %2 = vsyncpa [#allocation0], 0
    %s3 = sshll.u32 %s1, 4
    %s4 = int_to_ptr.vmem [resolvable:$true] %s3
    %6 = dma.hbm_to_vmem [thread:$0]  %s0, 2048, %s4, [#allocation0]
    %7 = dma.done [#allocation0], 2048
    %8 = vsyncpa [#allocation0], 1

// kernel: custom-call.3
$region0: #{custom-call.3}
  %s0 = inlined_call_operand.hbm [shape: c64[2,2,32,32], index: 0, kind: input, shape index: {}]
  %s1 = inlined_call_operand.vmem [shape: f32[2,2,32,32], index: 1, kind: output, shape index: {}]
  %s2 = scalar_lea.hbm %s0, 2048
  $region1: #{custom-call.3} parent=0
    #allocation0 [shape = 's32[1]{0}', space=sflag, size = 0x4, scoped, tag = 'scoped memory for custom-call.3']
    %3 = vsyncpa [#allocation0], 0
    %s4 = sshll.u32 %s1, 4
    %s5 = int_to_ptr.vmem [resolvable:$true] %s4
    %7 = dma.hbm_to_vmem [thread:$0]  %s2, 2048, %s5, [#allocation0]
    %8 = dma.done [#allocation0], 2048
    %9 = vsyncpa [#allocation0], 1

// kernel: custom-call.4
$region0: #{custom-call.4}
  %s0 = inlined_call_operand.vmem [shape: f32[2,4,32,32], index: 0, kind: input, shape index: {}]
  %s1 = inlined_call_operand.vmem [shape: f32[2,4,32,32], index: 1, kind: input, shape index: {}]
  %s2 = inlined_call_operand.hbm [shape: c64[2,4,32,32], index: 2, kind: output, shape index: {}]
  %s3 = scalar_lea.hbm %s2, 4096
  $region1: #{custom-call.4} parent=0
    #allocation0 [shape = 's32[1]{0}', space=sflag, size = 0x4, scoped, tag = 'scoped memory for custom-call.4']
    %4 = vsyncpa [#allocation0], 0
    %s5 = sshll.u32 %s0, 4
    %s6 = int_to_ptr.vmem [resolvable:$true] %s5
    %8 = dma.vmem_to_hbm [thread:$0]  %s6, 4096, %s2, [#allocation0]
    %9 = dma.done [#allocation0], 4096
    %10 = vsyncpa [#allocation0], 1
  $region2: #{custom-call.4} parent=0
    #allocation1 [shape = 's32[1]{0}', space=sflag, size = 0x4, scoped, tag = 'scoped memory for custom-call.4']
    %11 = vsyncpa [#allocation1], 0
    %s12 = sshll.u32 %s1, 4
    %s13 = int_to_ptr.vmem [resolvable:$true] %s12
    %15 = dma.vmem_to_hbm [thread:$0]  %s13, 4096, %s3, [#allocation1]
    %16 = dma.done [#allocation1], 4096
    %17 = vsyncpa [#allocation1], 1

// kernel: upsample_forward.1
$region0: #{upsample_forward.1}
  #allocation0 [shape = 'u32[]', space=smem, size = 0x4, offset = 0x4, fixed_abs, tag = 'smem constant byte address 0x4 - core index']
  #allocation1 [shape = 'u32[144,128]{1,0:T(1,128)}', space=vmem, size = 0x12000, scoped, tag = 'internal scratch']
  %s0 = inlined_call_operand.vmem [shape: f32[2,4,256], index: 0, kind: input, shape index: {}]
  %s1 = inlined_call_operand.vmem [shape: f32[2,4,256], index: 1, kind: input, shape index: {}]
  %s2 = inlined_call_operand.vmem [shape: f32[4,4], index: 2, kind: input, shape index: {}]
  %s3 = inlined_call_operand.vmem [shape: f32[4,4], index: 3, kind: input, shape index: {}]
  %s4 = inlined_call_operand.vmem [shape: f32[4,1], index: 4, kind: input, shape index: {}]
  %s5 = inlined_call_operand.vmem [shape: f32[2,4,256], index: 5, kind: output, shape index: {}]
  %s6 = sld [smem:[#allocation0]]
  $region53: #{upsample_forward.1} parent=0
    _
  %s8 = ssub.s32 1, %s6
  %s9 = scalar_select 0, %s8, %s6
  loop: start=0, step=1, limit=4
  $region2: #{upsample_forward.1} parent=0 // loop_pre_header
    _
  $region3: #{upsample_forward.1} parent=0 // loop_header
    %s11 = sphi 0, %s15
    %p12 = scmp.ge.s32.totalorder %s11, 4
    %s18 = sphi 0, %s30
    %s19 = sphi 0, %s26
    %s20 = sphi 0, %s18
    %s21 = sphi 0, %s19
    %s22 = sphi 0, %s20
    %s23 = sphi 0, %s21
    %s35 = sphi 0, %s37
    %s38 = sphi 0, %s35
    %s39 = sphi 0, %s38
    %s55 = sphi 0, %s39
    %s63 = sphi 0, %s65
    %s66 = sphi 0, %s63
    %s67 = sphi 0, %s66
    %s83 = sphi 0, %s67
    %s87 = sphi 0, %s87
    %s89 = sphi 0, %s87
    %s90 = sphi 0, %s89
    %s104 = sphi 0, %s90
    %s108 = sphi 0, %s108
    %s110 = sphi 0, %s108
    %s111 = sphi 0, %s110
    %s125 = sphi 0, %s111
    %s129 = sphi 0, %s129
    %s131 = sphi 0, %s129
    %s132 = sphi 0, %s131
    %s146 = sphi 0, %s132
    %s154 = sphi 0, %s156
    %s157 = sphi 0, %s154
    %s158 = sphi 0, %s157
    %s174 = sphi 0, %s158
  $region4: #{upsample_forward.1} parent=0 // loop_header_branch
    %14 = sbr.rel (%p12) target = $region8
  $region5: #{upsample_forward.1} parent=0 // loop_body
    %s16 = ssub.s32 %s11, 1
    %s17 = ssub.s32 %s11, 2
    %s24 = sadd.s32 1, %s19
    %p25 = scmp.ge.s32.totalorder %s24, 1
    %s26 = scalar_select %p25, 0, %s24
    %s27 = sadd.s32 1, %s18
    %s28 = scalar_select %p25, %s27, %s18
    %p29 = scmp.ge.s32.totalorder %s28, 2
    %s30 = scalar_select %p29, 0, %s28
    %s31 = ssub.s32 %s18, %s30
    %s32 = ssub.s32 %s19, %s26
    %s33 = sor.u32 %s31, %s32
    %p34 = scmp.eq.s32.totalorder %s33, 0
    %s36 = sadd.s32 %s35, 1
    %s37 = scalar_select %p34, %s35, %s36
    %p40 = pneg %p34
    %p41 = scmp.eq.s32.totalorder %s11, 1
    %p42 = por %p40, %p41
    %p43 = scmp.ne.s32.totalorder %s35, %s38
    %p44 = scmp.eq.s32.totalorder %s11, 0
    %p45 = por %p43, %p44
    %p46 = scmp.ne.s32.totalorder %s35, %s38
    %p47 = scmp.eq.s32.totalorder %s16, 1
    %p48 = por %p46, %p47
    %p49 = scmp.ne.s32.totalorder %s38, %s39
    %p50 = scmp.eq.s32.totalorder %s16, 0
    %p51 = por %p49, %p50
    %p52 = scmp.ne.s32.totalorder %s38, %s39
    %p53 = scmp.eq.s32.totalorder %s17, 1
    %p54 = por %p52, %p53
    %p56 = scmp.ne.s32.totalorder %s39, %s55
    %p57 = scmp.eq.s32.totalorder %s17, 0
    %p58 = por %p56, %p57
    %s59 = ssub.s32 %s18, %s30
    %s60 = ssub.s32 %s19, %s26
    %s61 = sor.u32 %s59, %s60
    %p62 = scmp.eq.s32.totalorder %s61, 0
    %s64 = sadd.s32 %s63, 1
    %s65 = scalar_select %p62, %s63, %s64
    %p68 = pneg %p62
    %p69 = scmp.eq.s32.totalorder %s11, 1
    %p70 = por %p68, %p69
    %p71 = scmp.ne.s32.totalorder %s63, %s66
    %p72 = scmp.eq.s32.totalorder %s11, 0
    %p73 = por %p71, %p72
    %p74 = scmp.ne.s32.totalorder %s63, %s66
    %p75 = scmp.eq.s32.totalorder %s16, 1
    %p76 = por %p74, %p75
    %p77 = scmp.ne.s32.totalorder %s66, %s67
    %p78 = scmp.eq.s32.totalorder %s16, 0
    %p79 = por %p77, %p78
    %p80 = scmp.ne.s32.totalorder %s66, %s67
    %p81 = scmp.eq.s32.totalorder %s17, 1
    %p82 = por %p80, %p81
    %p84 = scmp.ne.s32.totalorder %s67, %s83
    %p85 = scmp.eq.s32.totalorder %s17, 0
    %p86 = por %p84, %p85
    %s88 = sadd.s32 %s87, 1
    %p91 = scmp.eq.s32.totalorder %s11, 1
    %p92 = scmp.ne.s32.totalorder %s87, %s89
    %p93 = scmp.eq.s32.totalorder %s11, 0
    %p94 = por %p92, %p93
    %p95 = scmp.ne.s32.totalorder %s87, %s89
    %p96 = scmp.eq.s32.totalorder %s16, 1
    %p97 = por %p95, %p96
    %p98 = scmp.ne.s32.totalorder %s89, %s90
    %p99 = scmp.eq.s32.totalorder %s16, 0
    %p100 = por %p98, %p99
    %p101 = scmp.ne.s32.totalorder %s89, %s90
    %p102 = scmp.eq.s32.totalorder %s17, 1
    %p103 = por %p101, %p102
    %p105 = scmp.ne.s32.totalorder %s90, %s104
    %p106 = scmp.eq.s32.totalorder %s17, 0
    %p107 = por %p105, %p106
    %s109 = sadd.s32 %s108, 1
    %p112 = scmp.eq.s32.totalorder %s11, 1
    %p113 = scmp.ne.s32.totalorder %s108, %s110
    %p114 = scmp.eq.s32.totalorder %s11, 0
    %p115 = por %p113, %p114
    %p116 = scmp.ne.s32.totalorder %s108, %s110
    %p117 = scmp.eq.s32.totalorder %s16, 1
    %p118 = por %p116, %p117
    %p119 = scmp.ne.s32.totalorder %s110, %s111
    %p120 = scmp.eq.s32.totalorder %s16, 0
    %p121 = por %p119, %p120
    %p122 = scmp.ne.s32.totalorder %s110, %s111
    %p123 = scmp.eq.s32.totalorder %s17, 1
    %p124 = por %p122, %p123
    %p126 = scmp.ne.s32.totalorder %s111, %s125
    %p127 = scmp.eq.s32.totalorder %s17, 0
    %p128 = por %p126, %p127
    %s130 = sadd.s32 %s129, 1
    %p133 = scmp.eq.s32.totalorder %s11, 1
    %p134 = scmp.ne.s32.totalorder %s129, %s131
    %p135 = scmp.eq.s32.totalorder %s11, 0
    %p136 = por %p134, %p135
    %p137 = scmp.ne.s32.totalorder %s129, %s131
    %p138 = scmp.eq.s32.totalorder %s16, 1
    %p139 = por %p137, %p138
    %p140 = scmp.ne.s32.totalorder %s131, %s132
    %p141 = scmp.eq.s32.totalorder %s16, 0
    %p142 = por %p140, %p141
    %p143 = scmp.ne.s32.totalorder %s131, %s132
    %p144 = scmp.eq.s32.totalorder %s17, 1
    %p145 = por %p143, %p144
    %p147 = scmp.ne.s32.totalorder %s132, %s146
    %p148 = scmp.eq.s32.totalorder %s17, 0
    %p149 = por %p147, %p148
    %s150 = ssub.s32 %s18, %s30
    %s151 = ssub.s32 %s19, %s26
    %s152 = sor.u32 %s150, %s151
    %p153 = scmp.eq.s32.totalorder %s152, 0
    %s155 = sadd.s32 %s154, 1
    %s156 = scalar_select %p153, %s154, %s155
    %p159 = pneg %p153
    %p160 = scmp.eq.s32.totalorder %s11, 1
    %p161 = por %p159, %p160
    %p162 = scmp.ne.s32.totalorder %s154, %s157
    %p163 = scmp.eq.s32.totalorder %s11, 0
    %p164 = por %p162, %p163
    %p165 = scmp.ne.s32.totalorder %s154, %s157
    %p166 = scmp.eq.s32.totalorder %s16, 1
    %p167 = por %p165, %p166
    %p168 = scmp.ne.s32.totalorder %s157, %s158
    %p169 = scmp.eq.s32.totalorder %s16, 0
    %p170 = por %p168, %p169
    %p171 = scmp.ne.s32.totalorder %s157, %s158
    %p172 = scmp.eq.s32.totalorder %s17, 1
    %p173 = por %p171, %p172
    %p175 = scmp.ne.s32.totalorder %s158, %s174
    %p176 = scmp.eq.s32.totalorder %s17, 0
    %p177 = por %p175, %p176
    %p178 = scmp.le.s32.totalorder 1, %s11
    %p179 = scmp.lt.s32.totalorder %s11, 3
    %p180 = pnand %p178, %p179
    %p181 = pneg %p180
    // Predicated region
    $region9: #{upsample_forward.1} parent=5 // pred_check
      _
    $region10: #{upsample_forward.1} parent=5 // pred_check_branch
      %183 = sbr.rel (%p180) target = $region12
    $region11: #{upsample_forward.1} parent=5 // pred_region
      %s184 = ssub.s32 %s11, 1
      // Predicated region
      $region13: #{upsample_forward.1} parent=11 // pred_check
        %p185 = pneg %p100
      $region14: #{upsample_forward.1} parent=11 // pred_check_branch
        %187 = sbr.rel (%p185) target = $region16
      $region15: #{upsample_forward.1} parent=11 // pred_region
        _
      $region16: #{upsample_forward.1} parent=11 // pred_fallthru
        _
      // Predicated region
      $region17: #{upsample_forward.1} parent=11 // pred_check
        %p188 = pneg %p121
      $region18: #{upsample_forward.1} parent=11 // pred_check_branch
        %190 = sbr.rel (%p188) target = $region20
      $region19: #{upsample_forward.1} parent=11 // pred_region
        _
      $region20: #{upsample_forward.1} parent=11 // pred_fallthru
        _
      // Predicated region
      $region21: #{upsample_forward.1} parent=11 // pred_check
        %p191 = pneg %p142
      $region22: #{upsample_forward.1} parent=11 // pred_check_branch
        %193 = sbr.rel (%p191) target = $region24
      $region23: #{upsample_forward.1} parent=11 // pred_region
        _
      $region24: #{upsample_forward.1} parent=11 // pred_fallthru
        _
    $region12: #{upsample_forward.1} parent=5 // pred_fallthru
      _
    %p194 = scmp.lt.s32.totalorder %s11, 2
    // Predicated region
    $region25: #{upsample_forward.1} parent=5 // pred_check
      %p195 = pneg %p194
    $region26: #{upsample_forward.1} parent=5 // pred_check_branch
      %197 = sbr.rel (%p195) target = $region28
    $region27: #{upsample_forward.1} parent=5 // pred_region
      // Predicated region
      $region29: #{upsample_forward.1} parent=27 // pred_check
        %p198 = pneg %p45
      $region30: #{upsample_forward.1} parent=27 // pred_check_branch
        %200 = sbr.rel (%p198) target = $region32
      $region31: #{upsample_forward.1} parent=27 // pred_region
        %s201 = smul.u32 2, %s19
        %p202 = scmp.lt.s32.totalorder %s18, 1
        %s203 = scalar_select %p202, %s18, 1
        %p204 = scmp.lt.s32.totalorder %s201, 1
        %s205 = scalar_select %p204, %s201, 1
        %s206 = smul.addr %s203, 2
        %s207 = sadd.s32 %s205, %s206
        %s208 = smul.addr %s207, 4
        %s209 = scalar_lea.vmem %s0, %s208
        %s210 = smul.u32 2, %s19
      $region32: #{upsample_forward.1} parent=27 // pred_fallthru
        _
      // Predicated region
      $region33: #{upsample_forward.1} parent=27 // pred_check
        %p211 = pneg %p73
      $region34: #{upsample_forward.1} parent=27 // pred_check_branch
        %213 = sbr.rel (%p211) target = $region36
      $region35: #{upsample_forward.1} parent=27 // pred_region
        %s214 = smul.u32 2, %s19
        %p215 = scmp.lt.s32.totalorder %s18, 1
        %s216 = scalar_select %p215, %s18, 1
        %p217 = scmp.lt.s32.totalorder %s214, 1
        %s218 = scalar_select %p217, %s214, 1
        %s219 = smul.addr %s216, 2
        %s220 = sadd.s32 %s218, %s219
        %s221 = smul.addr %s220, 4
        %s222 = scalar_lea.vmem %s1, %s221
        %s223 = smul.u32 2, %s19
      $region36: #{upsample_forward.1} parent=27 // pred_fallthru
        _
    $region28: #{upsample_forward.1} parent=5 // pred_fallthru
      _
    %p224 = scmp.le.s32.totalorder 1, %s11
    %p225 = scmp.lt.s32.totalorder %s11, 3
    %p226 = pnand %p224, %p225
    %p227 = pneg %p226
    // Predicated region
    $region37: #{upsample_forward.1} parent=5 // pred_check
      _
    $region38: #{upsample_forward.1} parent=5 // pred_check_branch
      %229 = sbr.rel (%p226) target = $region40
    $region39: #{upsample_forward.1} parent=5 // pred_region
      %s230 = ssub.s32 %s11, 1
      %s231 = smul.u32 2, %s21
      %p232 = scmp.lt.s32.totalorder %s20, 1
      %s233 = scalar_select %p232, %s20, 1
      %p234 = scmp.lt.s32.totalorder %s231, 1
      %s235 = scalar_select %p234, %s231, 1
      %s236 = smul.addr %s233, 2
      %s237 = sadd.s32 %s235, %s236
      %s238 = smul.addr %s237, 4
      %s239 = scalar_lea.vmem %s0, %s238
      %p240 = pneg %p51
      %p241 = pneg %p48
      %s242 = smul.u32 2, %s21
      %p243 = scmp.lt.s32.totalorder %s20, 1
      %s244 = scalar_select %p243, %s20, 1
      %p245 = scmp.lt.s32.totalorder %s242, 1
      %s246 = scalar_select %p245, %s242, 1
      %s247 = smul.addr %s244, 2
      %s248 = sadd.s32 %s246, %s247
      %s249 = smul.addr %s248, 4
      %s250 = scalar_lea.vmem %s1, %s249
      %p251 = pneg %p79
      %p252 = pneg %p76
      %p253 = pneg %p100
      %p254 = pneg %p97
      %p255 = pneg %p121
      %p256 = pneg %p118
      %p257 = pneg %p142
      %p258 = pneg %p139
      %p259 = pneg %p170
      %p260 = pneg %p167
      %s261 = smul.u32 2, %s21
      %p262 = scmp.lt.s32.totalorder %s20, 1
      %s263 = scalar_select %p262, %s20, 1
      %p264 = scmp.lt.s32.totalorder %s261, 1
      %s265 = scalar_select %p264, %s261, 1
      %s266 = smul.addr %s263, 2
      %s267 = sadd.s32 %s265, %s266
      %s268 = smul.addr %s267, 4
      %s269 = scalar_lea.vmem %s5, %s268
      %s270 = smul.u32 2, %s21
      %p271 = scmp.lt.s32.totalorder %s20, 1
      %s272 = scalar_select %p271, %s20, 1
      %p273 = scmp.lt.s32.totalorder %s270, 1
      %s274 = scalar_select %p273, %s270, 1
      %s275 = smul.addr %s272, 2
      %s276 = sadd.s32 %s274, %s275
      %s277 = smul.addr %s276, 4
      %s278 = scalar_lea.vmem %s0, %s277
      %s279 = smul.u32 2, %s21
      %s280 = smul.u32 2, %s21
      %p281 = scmp.lt.s32.totalorder %s20, 1
      %s282 = scalar_select %p281, %s20, 1
      %p283 = scmp.lt.s32.totalorder %s280, 1
      %s284 = scalar_select %p283, %s280, 1
      %s285 = smul.addr %s282, 2
      %s286 = sadd.s32 %s284, %s285
      %s287 = smul.addr %s286, 4
      %s288 = scalar_lea.vmem %s1, %s287
      %s289 = smul.u32 2, %s21
      %s290 = smul.u32 2, %s21
      %p291 = scmp.lt.s32.totalorder %s20, 1
      %s292 = scalar_select %p291, %s20, 1
      %p293 = scmp.lt.s32.totalorder %s290, 1
      %s294 = scalar_select %p293, %s290, 1
      %s295 = smul.addr %s292, 2
      %s296 = sadd.s32 %s294, %s295
      %s297 = smul.addr %s296, 4
      %s298 = scalar_lea.vmem %s5, %s297
      %s299 = smul.u32 2, %s21
      %v300 = vld [vmem:[%s2] sm:$0xf]
      %v301 = vld [vmem:[%s278] sm:$0xff]
      %v302 = vld [vmem:[%s3] sm:$0xf]
      %v303 = vld [vmem:[%s288] sm:$0xff]
      %v305 = vcombine.high %v303, %v303
      %vm306 = vcmask 31744
      %v308 = vsel %vm306, %v302, 0
      %vm310 = vcmask 1043456
      %v311 = vsel %vm310, %v303, 0
      %v313 = vsel %vm310, %v305, 0
      %315 = vmatprep.subr.mxu0 0.0
      %316 = vmatpush1.msra.mxu0 0.0
      %317 = vmatprep.subr.mxu0 0.0
      %318 = vmatpush1.msra.mxu0 0.0
      %319 = vmatprep.subr.mxu0 0.0
      %320 = vmatpush1.msra.mxu0 0.0
      %321 = vmatprep.subr.mxu0 0.0
      %322 = vmatpush1.msra.mxu0 0.0
      %323 = vmatprep.subr.mxu0 0.0
      %324 = vmatpush1.msra.mxu0 0.0
      %325 = vmatprep.subr.mxu0 0.0
      %326 = vmatpush1.msra.mxu0 0.0
      %327 = vmatprep.subr.mxu0 0.0
      %328 = vmatpush1.msra.mxu0 0.0
      %329 = vmatprep.subr.mxu0 0.0
      %330 = vmatpush1.msra.mxu0 0.0
      %331 = vmatprep.subr.mxu0 0.0
      %332 = vmatpush1.msra.mxu0 0.0
      %333 = vmatprep.subr.mxu0 0.0
      %334 = vmatpush1.msra.mxu0 0.0
      %335 = vmatprep.subr.mxu0 0.0
      %336 = vmatpush1.msra.mxu0 0.0
      %337 = vmatprep.subr.mxu0 0.0
      %338 = vmatpush1.msra.mxu0 0.0
      %339 = vmatprep.subr.mxu0 0.0
      %340 = vmatpush1.msra.mxu0 0.0
      %341 = vmatprep.subr.mxu0 0.0
      %342 = vmatpush1.msra.mxu0 0.0
      %343 = vmatprep.subr.mxu0 0.0
      %344 = vmatpush1.msra.mxu0 0.0
      %345 = vmatprep.subr.mxu0 %v313
      %346 = vmatpush1.msra.mxu0 %v311
      %347 = vmatprep.subr.mxu0 0.0
      %348 = vmatpush2.msra.mxu0 0.0
      %349 = vmatprep.subr.mxu0 0.0
      %350 = vmatpush2.msra.mxu0 0.0
      %351 = vmatprep.subr.mxu0 0.0
      %352 = vmatpush2.msra.mxu0 0.0
      %353 = vmatprep.subr.mxu0 0.0
      %354 = vmatpush2.msra.mxu0 0.0
      %355 = vmatprep.subr.mxu0 0.0
      %356 = vmatpush2.msra.mxu0 0.0
      %357 = vmatprep.subr.mxu0 0.0
      %358 = vmatpush2.msra.mxu0 0.0
      %359 = vmatprep.subr.mxu0 0.0
      %360 = vmatpush2.msra.mxu0 0.0
      %361 = vmatprep.subr.mxu0 0.0
      %362 = vmatpush2.msra.mxu0 0.0
      %363 = vmatprep.subr.mxu0 0.0
      %364 = vmatpush2.msra.mxu0 0.0
      %365 = vmatprep.subr.mxu0 0.0
      %366 = vmatpush2.msra.mxu0 0.0
      %367 = vmatprep.subr.mxu0 0.0
      %368 = vmatpush2.msra.mxu0 0.0
      %369 = vmatprep.subr.mxu0 0.0
      %370 = vmatpush2.msra.mxu0 0.0
      %371 = vmatprep.subr.mxu0 0.0
      %372 = vmatpush2.msra.mxu0 0.0
      %373 = vmatprep.subr.mxu0 0.0
      %374 = vmatpush2.msra.mxu0 0.0
      %375 = vmatprep.subr.mxu0 0.0
      %376 = vmatpush2.msra.mxu0 0.0
      %377 = vmatprep.subr.mxu0 0.0
      %378 = vmatpush2.msra.mxu0 0.0
      %379 = vmatprep.mubr.f32.mxu0 0.0
      %380 = vmatmul.mubr.f32.gmra.mxu0 %v308
      %v381 = vpop.f32.mrf.mxu0
      %v382 = vadd.f32 0.0, %v381
      %v383 = vpop.f32.mrf.mxu0
      %v384 = vadd.f32 0.0, %v383
      %385 = vdwg.mxu0
      %v387 = vcombine.high %v301, %v301
      %v389 = vsel %vm306, %v300, 0
      %v391 = vsel %vm310, %v301, 0
      %v393 = vsel %vm310, %v387, 0
      %395 = vmatprep.subr.mxu0 0.0
      %396 = vmatpush1.msra.mxu0 0.0
      %397 = vmatprep.subr.mxu0 0.0
      %398 = vmatpush1.msra.mxu0 0.0
      %399 = vmatprep.subr.mxu0 0.0
      %400 = vmatpush1.msra.mxu0 0.0
      %401 = vmatprep.subr.mxu0 0.0
      %402 = vmatpush1.msra.mxu0 0.0
      %403 = vmatprep.subr.mxu0 0.0
      %404 = vmatpush1.msra.mxu0 0.0
      %405 = vmatprep.subr.mxu0 0.0
      %406 = vmatpush1.msra.mxu0 0.0
      %407 = vmatprep.subr.mxu0 0.0
      %408 = vmatpush1.msra.mxu0 0.0
      %409 = vmatprep.subr.mxu0 0.0
      %410 = vmatpush1.msra.mxu0 0.0
      %411 = vmatprep.subr.mxu0 0.0
      %412 = vmatpush1.msra.mxu0 0.0
      %413 = vmatprep.subr.mxu0 0.0
      %414 = vmatpush1.msra.mxu0 0.0
      %415 = vmatprep.subr.mxu0 0.0
      %416 = vmatpush1.msra.mxu0 0.0
      %417 = vmatprep.subr.mxu0 0.0
      %418 = vmatpush1.msra.mxu0 0.0
      %419 = vmatprep.subr.mxu0 0.0
      %420 = vmatpush1.msra.mxu0 0.0
      %421 = vmatprep.subr.mxu0 0.0
      %422 = vmatpush1.msra.mxu0 0.0
      %423 = vmatprep.subr.mxu0 0.0
      %424 = vmatpush1.msra.mxu0 0.0
      %425 = vmatprep.subr.mxu0 %v393
      %426 = vmatpush1.msra.mxu0 %v391
      %427 = vmatprep.subr.mxu0 0.0
      %428 = vmatpush2.msra.mxu0 0.0
      %429 = vmatprep.subr.mxu0 0.0
      %430 = vmatpush2.msra.mxu0 0.0
      %431 = vmatprep.subr.mxu0 0.0
      %432 = vmatpush2.msra.mxu0 0.0
      %433 = vmatprep.subr.mxu0 0.0
      %434 = vmatpush2.msra.mxu0 0.0
      %435 = vmatprep.subr.mxu0 0.0
      %436 = vmatpush2.msra.mxu0 0.0
      %437 = vmatprep.subr.mxu0 0.0
      %438 = vmatpush2.msra.mxu0 0.0
      %439 = vmatprep.subr.mxu0 0.0
      %440 = vmatpush2.msra.mxu0 0.0
      %441 = vmatprep.subr.mxu0 0.0
      %442 = vmatpush2.msra.mxu0 0.0
      %443 = vmatprep.subr.mxu0 0.0
      %444 = vmatpush2.msra.mxu0 0.0
      %445 = vmatprep.subr.mxu0 0.0
      %446 = vmatpush2.msra.mxu0 0.0
      %447 = vmatprep.subr.mxu0 0.0
      %448 = vmatpush2.msra.mxu0 0.0
      %449 = vmatprep.subr.mxu0 0.0
      %450 = vmatpush2.msra.mxu0 0.0
      %451 = vmatprep.subr.mxu0 0.0
      %452 = vmatpush2.msra.mxu0 0.0
      %453 = vmatprep.subr.mxu0 0.0
      %454 = vmatpush2.msra.mxu0 0.0
      %455 = vmatprep.subr.mxu0 0.0
      %456 = vmatpush2.msra.mxu0 0.0
      %457 = vmatprep.subr.mxu0 0.0
      %458 = vmatpush2.msra.mxu0 0.0
      %459 = vmatprep.mubr.f32.mxu0 0.0
      %460 = vmatmul.mubr.f32.gmra.mxu0 %v389
      %v461 = vpop.f32.mrf.mxu0
      %v462 = vadd.f32 %v382, %v461
      %v463 = vpop.f32.mrf.mxu0
      %v464 = vadd.f32 %v384, %v463
      %465 = vdwg.mxu0
      %v466 = vld [vmem:[%s4] sm:$0xf]
      %468 = vset.pattern.permute.xlu0 0
      %469 = vperm.xlu0 %468, %v466
      %v470 = vpop.permute.xlu0 %469
      %v472 = vadd.f32 %v462, %v470
      %v473 = vadd.f32 %v464, %v470
      %v476 = vcombine.low %v472, %v473
      %478 = vst [vmem:[%s298] sm:$0xff] %v476
      %s479 = smul.u32 2, %s21
      %p480 = scmp.lt.s32.totalorder %s20, 1
      %s481 = scalar_select %p480, %s20, 1
      %p482 = scmp.lt.s32.totalorder %s479, 1
      %s483 = scalar_select %p482, %s479, 1
      %s484 = smul.addr %s481, 2
      %s485 = sadd.s32 %s483, %s484
      %s486 = smul.addr %s485, 4
      %s487 = scalar_lea.vmem %s5, %s486
      // Predicated region
      $region41: #{upsample_forward.1} parent=39 // pred_check
        %p488 = pneg %p167
      $region42: #{upsample_forward.1} parent=39 // pred_check_branch
        %490 = sbr.rel (%p488) target = $region44
      $region43: #{upsample_forward.1} parent=39 // pred_region
        %s491 = smul.u32 2, %s21
      $region44: #{upsample_forward.1} parent=39 // pred_fallthru
        _
    $region40: #{upsample_forward.1} parent=5 // pred_fallthru
      _
    %p492 = scmp.le.s32.totalorder 2, %s11
    // Predicated region
    $region45: #{upsample_forward.1} parent=5 // pred_check
      %p493 = pneg %p492
    $region46: #{upsample_forward.1} parent=5 // pred_check_branch
      %495 = sbr.rel (%p493) target = $region48
    $region47: #{upsample_forward.1} parent=5 // pred_region
      %s496 = ssub.s32 %s11, 2
      // Predicated region
      $region49: #{upsample_forward.1} parent=47 // pred_check
        %p497 = pneg %p173
      $region50: #{upsample_forward.1} parent=47 // pred_check_branch
        %499 = sbr.rel (%p497) target = $region52
      $region51: #{upsample_forward.1} parent=47 // pred_region
        %s500 = smul.u32 2, %s23
        %p501 = scmp.lt.s32.totalorder %s22, 1
        %s502 = scalar_select %p501, %s22, 1
        %p503 = scmp.lt.s32.totalorder %s500, 1
        %s504 = scalar_select %p503, %s500, 1
        %s505 = smul.addr %s502, 2
        %s506 = sadd.s32 %s504, %s505
        %s507 = smul.addr %s506, 4
        %s508 = scalar_lea.vmem %s5, %s507
      $region52: #{upsample_forward.1} parent=47 // pred_fallthru
        _
    $region48: #{upsample_forward.1} parent=5 // pred_fallthru
      _
  $region6: #{upsample_forward.1} parent=0 // loop_footer
    %s15 = sadd.s32 1, %s11
  $region7: #{upsample_forward.1} parent=0 // loop_footer_branch
    %10 = sbr.rel target = $region3
  $region8: #{upsample_forward.1} parent=0 // loop_exit
    _

</llo_original>
